<compile_context>
chip_gen: v6e
topology: v6e:2x2x1
jax: 0.10.0
libtpu: 0.0.40
codegen_flags: <defaults>
</compile_context>

<pallas_src>
import functools
import math

import jax
import jax.numpy as jnp
from jax import lax
from jax.experimental import pallas as pl
from jax.experimental.pallas import tpu as pltpu


# Lane-replication width for the running-max / running-sum scratch.
_REP = 128

# Finite stand-in for -inf in the running row-max (avoids exp(-inf - (-inf))=NaN
# when an entire row of a K-block is masked). Any real score is far above this.
_NEG_FLOOR = -0.7 * float(jnp.finfo(jnp.float32).max)


def _round_up(x, m):
    return (x + m - 1) // m * m


def _lane_bcast(rep, width):
    """Broadcast a lane-replicated (rows, _REP) tile to (rows, width).

    Every lane of `rep` already holds the same value, so this is vreg
    copies / static slices only -- no cross-lane relayout.
    """
    if width == _REP:
        return rep
    if width < _REP:
        return rep[:, :width]
    if width % _REP == 0:
        return jnp.tile(rep, (1, width // _REP))
    return jnp.tile(rep, (1, pl.cdiv(width, _REP)))[:, :width]


def _sdpa_kernel(q_ref, k_ref, v_ref, mask_ref, o_ref,
                 q_sc, m_sc, l_sc, acc_sc, *, inv_temper, compute_dtype):
    # Block shapes:
    #   q_ref: (1, tq, Dk)   k_ref: (1, tk, Dk)   v_ref: (1, tk, Dv)
    #   mask_ref: (1, tq, tk) int8                o_ref: (1, tq, Dv)
    #   scratch: q_sc (tq, Dk) compute_dtype, m_sc/l_sc (tq, 128) f32,
    #            acc_sc (tq, Dv) f32
    ki = pl.program_id(2)

    @pl.when(ki == 0)
    def _init():
        # q block is resident across all ki (its index_map ignores ki); hoist
        # the 1/sqrt(d_k) scale + MXU-dtype cast so they run once per q-block.
        q_sc[...] = (q_ref[0] * inv_temper).astype(compute_dtype)
        m_sc[...] = jnp.full_like(m_sc, _NEG_FLOOR)
        l_sc[...] = jnp.zeros_like(l_sc)
        acc_sc[...] = jnp.zeros_like(acc_sc)

    k = k_ref[0].astype(compute_dtype)       # (tk, Dk) MXU operand
    v = v_ref[0].astype(compute_dtype)       # (tk, Dv) MXU operand
    mask = mask_ref[0]                       # (tq, tk) int8, nonzero => masked

    # q @ k^T without materializing k.T: contract over Dk on both operands.
    scores = lax.dot_general(
        q_sc[...], k,
        dimension_numbers=(((1,), (1,)), ((), ())),
        preferred_element_type=jnp.float32)               # (tq, tk) f32

    # masked_fill_(attn_mask, -inf)
    scores = jnp.where(mask != 0, -jnp.inf, scores)

    # Online (flash) softmax update; m/l kept lane-replicated at width 128,
    # exp and rescales stay f32 (v5e has no bf16 VPU/EUP path).
    m_prev = m_sc[...]                                                # (tq, 128)
    m_new = jnp.maximum(m_prev, jnp.max(scores, axis=-1, keepdims=True))
    alpha = jnp.exp(m_prev - m_new)                                   # (tq, 128)
    p = jnp.exp(scores - _lane_bcast(m_new, scores.shape[-1]))        # masked -> 0

    l_sc[...] = alpha * l_sc[...] + jnp.sum(p, axis=-1, keepdims=True)
    acc_sc[...] = (_lane_bcast(alpha, acc_sc.shape[-1]) * acc_sc[...]
                   + jnp.dot(p.astype(compute_dtype), v,
                             preferred_element_type=jnp.float32))
    m_sc[...] = m_new

    # TODO(synk): nn.Dropout on attention weights is identity in eval mode;
    # training-mode dropout (pltpu.prng_random_bits mask + 1/(1-p) rescale) is
    # not applied here.

    @pl.when(ki == pl.num_programs(2) - 1)
    def _finalize():
        # Exact reciprocal: only tq values, once per q-block -> effectively free.
        inv_l = pl.reciprocal(l_sc[...], approx=False)
        o_ref[0] = (acc_sc[...]
                    * _lane_bcast(inv_l, acc_sc.shape[-1])).astype(o_ref.dtype)


def scaled_dot_product_attention(q, k, v, attn_mask, d_k, *,
                                 block_q=512, block_k=1024, mxu_dtype=None,
                                 vmem_limit_bytes=48 * 1024 * 1024):
    """q:[B,Lq,Dk] k:[B,Lk,Dk] v:[B,Lk,Dv] attn_mask:[B,Lq,Lk] (nonzero==masked).

    Note: rows that are fully masked across all of Lk produce Inf/NaN (softmax
    of all -inf), matching the PyTorch module's behavior.
    """
    B, Lq, Dk = q.shape
    _, Lk, _ = k.shape
    Dv = v.shape[-1]
    inv_temper = 1.0 / float(math.sqrt(d_k))

    # MXU native format is bf16 on v5e/v6e/v7x; accumulate in f32.
    if mxu_dtype is None:
        compute_dtype = jnp.bfloat16 if q.dtype == jnp.float32 else q.dtype
    else:
        compute_dtype = jnp.dtype(mxu_dtype)

    # ---- tile selection: pad ragged lengths instead of shrinking tiles ----
    n_q = pl.cdiv(Lq, block_q)
    if B == 1 and n_q == 1 and Lq >= 64:
        n_q = 2   # let the (B, n_q) parallel axes shard over v7x's 2 TensorCores
    if n_q == 1:
        tq, Lq_pad = Lq, Lq               # full-dim block: no alignment needed
    else:
        # 32 satisfies sublane tiling for f32 (8), bf16 (16) and the int8 mask (32).
        tq = _round_up(pl.cdiv(Lq, n_q), 32)
        Lq_pad = tq * n_q

    n_k = pl.cdiv(Lk, block_k)
    if n_k == 1:
        tk, Lk_pad = Lk, Lk
    else:
        tk = _round_up(pl.cdiv(Lk, n_k), 128)   # lane axis: multiple of 128
        Lk_pad = tk * n_k

    # Mask: keep caller's int8 untouched; otherwise one cheap byte-wide cast.
    # TODO(synk): structural (causal / padding-length) masks should be generated
    # in-kernel from iota + scalar-prefetched lengths instead of streaming an
    # O(Lq*Lk) tensor from HBM (and fully-masked blocks could be skipped).
    mask_i8 = attn_mask if attn_mask.dtype == jnp.int8 \
        else (attn_mask != 0).astype(jnp.int8)

    if Lq_pad != Lq:
        q = jnp.pad(q, ((0, 0), (0, Lq_pad - Lq), (0, 0)))
    if Lk_pad != Lk:
        k = jnp.pad(k, ((0, 0), (0, Lk_pad - Lk), (0, 0)))
        v = jnp.pad(v, ((0, 0), (0, Lk_pad - Lk), (0, 0)))
    if Lq_pad != Lq or Lk_pad != Lk:
        # Padded K columns are masked; padded Q rows are sliced off below.
        mask_i8 = jnp.pad(mask_i8,
                          ((0, 0), (0, Lq_pad - Lq), (0, Lk_pad - Lk)),
                          constant_values=1)

    kernel = functools.partial(_sdpa_kernel, inv_temper=inv_temper,
                               compute_dtype=compute_dtype)

    cost = pl.CostEstimate(
        flops=2 * B * Lq_pad * Lk_pad * (Dk + Dv),
        transcendentals=B * Lq_pad * Lk_pad,
        bytes_accessed=(q.size * q.dtype.itemsize
                        + k.size * k.dtype.itemsize
                        + v.size * v.dtype.itemsize
                        + mask_i8.size
                        + B * Lq_pad * Dv * q.dtype.itemsize))

    out = pl.pallas_call(
        kernel,
        out_shape=jax.ShapeDtypeStruct((B, Lq_pad, Dv), q.dtype),
        grid_spec=pltpu.PrefetchScalarGridSpec(
            num_scalar_prefetch=0,
            grid=(B, n_q, n_k),
            in_specs=[
                pl.BlockSpec((1, tq, Dk), lambda b, qi, ki: (b, qi, 0)),
                pl.BlockSpec((1, tk, Dk), lambda b, qi, ki: (b, ki, 0)),
                pl.BlockSpec((1, tk, Dv), lambda b, qi, ki: (b, ki, 0)),
                pl.BlockSpec((1, tq, tk), lambda b, qi, ki: (b, qi, ki)),
            ],
            out_specs=pl.BlockSpec((1, tq, Dv), lambda b, qi, ki: (b, qi, 0)),
            scratch_shapes=[
                pltpu.VMEM((tq, Dk), compute_dtype),   # scaled/cast q block
                pltpu.VMEM((tq, _REP), jnp.float32),   # running row max (lane-repl.)
                pltpu.VMEM((tq, _REP), jnp.float32),   # running row sum (lane-repl.)
                pltpu.VMEM((tq, Dv), jnp.float32),     # output accumulator
            ],
        ),
        compiler_params=pltpu.CompilerParams(
            dimension_semantics=("parallel", "parallel", "arbitrary"),
            vmem_limit_bytes=vmem_limit_bytes,         # fits v7x's 64 MiB/TC
        ),
        cost_estimate=cost,
    )(q, k, v, mask_i8)

    return out[:, :Lq] if Lq_pad != Lq else out


def _reference(q, k, v, attn_mask, d_k):
    temper = math.sqrt(d_k)
    attn = jnp.einsum("bqd,bkd->bqk", q, k) / temper
    attn = jnp.where(attn_mask, -jnp.inf, attn)
    attn = jax.nn.softmax(attn, axis=-1)
    return jnp.einsum("bqk,bkd->bqd", attn, v)


if __name__ == "__main__":
    # ---- Case 1: tiny shapes, single-tile grid --------------------------------
    key = jax.random.PRNGKey(0)
    B, Lq, Lk, Dk, Dv = 2, 8, 8, 32, 32

    kq, kk, kv, km = jax.random.split(key, 4)
    q = jax.random.normal(kq, (B, Lq, Dk), dtype=jnp.float32)
    k = jax.random.normal(kk, (B, Lk, Dk), dtype=jnp.float32)
    v = jax.random.normal(kv, (B, Lk, Dv), dtype=jnp.float32)
    # Mask a few positions (never an entire row, to keep softmax finite).
    mask = jax.random.bernoulli(km, p=0.2, shape=(B, Lq, Lk))
    mask = mask.at[:, :, 0].set(False)

    ref = _reference(q, k, v, mask, d_k=Dk)

    # Default path: bf16 MXU operands with f32 accumulation (standard
    # flash-attention numerics -> slightly looser tolerance vs. the f32 ref).
    out = jax.block_until_ready(scaled_dot_product_attention(q, k, v, mask, d_k=Dk))
    assert out.shape == (B, Lq, Dv)
    assert jnp.allclose(out, ref, atol=3e-2, rtol=3e-2), "bf16-MXU path mismatch"

    # Full-f32 MXU path (and exact reciprocal): tight tolerance.
    out32 = jax.block_until_ready(
        scaled_dot_product_attention(q, k, v, mask, d_k=Dk, mxu_dtype=jnp.float32))
    assert jnp.allclose(out32, ref, atol=1e-3, rtol=1e-3), "f32 path mismatch"

    # ---- Case 2: ragged lengths + multi-block grid (padding + online softmax) -
    B2, Lq2, Lk2, Dk2, Dv2 = 2, 136, 200, 32, 64
    kq2, kk2, kv2, km2 = jax.random.split(jax.random.PRNGKey(1), 4)
    q2 = jax.random.normal(kq2, (B2, Lq2, Dk2), dtype=jnp.float32)
    k2 = jax.random.normal(kk2, (B2, Lk2, Dk2), dtype=jnp.float32)
    v2 = jax.random.normal(kv2, (B2, Lk2, Dv2), dtype=jnp.float32)
    mask2 = jax.random.bernoulli(km2, p=0.2, shape=(B2, Lq2, Lk2))
    mask2 = mask2.at[:, :, 0].set(False)

    out2 = jax.block_until_ready(
        scaled_dot_product_attention(q2, k2, v2, mask2, d_k=Dk2,
                                     block_q=64, block_k=128))
    ref2 = _reference(q2, k2, v2, mask2, d_k=Dk2)
    assert out2.shape == (B2, Lq2, Dv2)
    assert jnp.allclose(out2, ref2, atol=3e-2, rtol=3e-2), "ragged/tiled path mismatch"

    print("KERNEL_OK")
</pallas_src>

<mosaic_0001>
module attributes {stable_mosaic.version = 11 : i64} {
  func.func @_sdpa_kernel(%arg0: i32, %arg1: i32, %arg2: i32, %arg3: memref<1x8x32xf32, #tpu.memory_space<vmem>>, %arg4: memref<1x8x32xf32, #tpu.memory_space<vmem>>, %arg5: memref<1x8x32xf32, #tpu.memory_space<vmem>>, %arg6: memref<1x8x8xi8, #tpu.memory_space<vmem>>, %arg7: memref<1x8x32xf32, #tpu.memory_space<vmem>>, %arg8: memref<8x32xbf16, #tpu.memory_space<vmem>>, %arg9: memref<8x128xf32, #tpu.memory_space<vmem>>, %arg10: memref<8x128xf32, #tpu.memory_space<vmem>>, %arg11: memref<8x32xf32, #tpu.memory_space<vmem>>) attributes {dimension_semantics = [#tpu.dimension_semantics<parallel>, #tpu.dimension_semantics<parallel>, #tpu.dimension_semantics<arbitrary>], iteration_bounds = array<i64: 2, 1, 1>, scalar_prefetch = 0 : i64, scratch_operands = 4 : i64, tpu.core_type = #tpu.core_type<tc>, window_params = [{transform_indices = @transform_0, window_bounds = array<i64: 1, 8, 32>}, {transform_indices = @transform_1, window_bounds = array<i64: 1, 8, 32>}, {transform_indices = @transform_2, window_bounds = array<i64: 1, 8, 32>}, {transform_indices = @transform_3, window_bounds = array<i64: 1, 8, 8>}, {transform_indices = @transform_4, window_bounds = array<i64: 1, 8, 32>}]} {
    %c0_i32 = arith.constant 0 : i32
    %0 = arith.cmpi eq, %arg2, %c0_i32 : i32
    %1 = arith.extui %0 : i1 to i32
    %c0_i32_0 = arith.constant 0 : i32
    %2 = arith.cmpi ne, %1, %c0_i32_0 : i32
    scf.if %2 {
      %c0_29 = arith.constant 0 : index
      %c0_30 = arith.constant 0 : index
      %c0_31 = arith.constant 0 : index
      %45 = vector.load %arg3[%c0_29, %c0_30, %c0_31] : memref<1x8x32xf32, #tpu.memory_space<vmem>>, vector<1x8x32xf32>
      %46 = vector.shape_cast %45 : vector<1x8x32xf32> to vector<8x32xf32>
      %cst_32 = arith.constant 0.176776692 : f32
      %47 = vector.broadcast %cst_32 : f32 to vector<8x32xf32>
      %48 = arith.mulf %46, %47 : vector<8x32xf32>
      %49 = arith.truncf %48 : vector<8x32xf32> to vector<8x32xbf16>
      %c0_33 = arith.constant 0 : index
      %c0_34 = arith.constant 0 : index
      %50 = vector.load %arg8[%c0_33, %c0_34] : memref<8x32xbf16, #tpu.memory_space<vmem>>, vector<8x32xbf16>
      tpu.vector_store %arg8[%c0_33, %c0_34], %49 {strides = array<i32>} : memref<8x32xbf16, #tpu.memory_space<vmem>>, vector<8x32xbf16>,
      %cst_35 = arith.constant -2.38197633E+38 : f32
      %51 = vector.broadcast %cst_35 : f32 to vector<8x128xf32>
      %c0_36 = arith.constant 0 : index
      %c0_37 = arith.constant 0 : index
      %52 = vector.load %arg9[%c0_36, %c0_37] : memref<8x128xf32, #tpu.memory_space<vmem>>, vector<8x128xf32>
      tpu.vector_store %arg9[%c0_36, %c0_37], %51 {strides = array<i32>} : memref<8x128xf32, #tpu.memory_space<vmem>>, vector<8x128xf32>,
      %cst_38 = arith.constant 0.000000e+00 : f32
      %53 = vector.broadcast %cst_38 : f32 to vector<8x128xf32>
      %c0_39 = arith.constant 0 : index
      %c0_40 = arith.constant 0 : index
      %54 = vector.load %arg10[%c0_39, %c0_40] : memref<8x128xf32, #tpu.memory_space<vmem>>, vector<8x128xf32>
      tpu.vector_store %arg10[%c0_39, %c0_40], %53 {strides = array<i32>} : memref<8x128xf32, #tpu.memory_space<vmem>>, vector<8x128xf32>,
      %cst_41 = arith.constant 0.000000e+00 : f32
      %55 = vector.broadcast %cst_41 : f32 to vector<8x32xf32>
      %c0_42 = arith.constant 0 : index
      %c0_43 = arith.constant 0 : index
      %56 = vector.load %arg11[%c0_42, %c0_43] : memref<8x32xf32, #tpu.memory_space<vmem>>, vector<8x32xf32>
      tpu.vector_store %arg11[%c0_42, %c0_43], %55 {strides = array<i32>} : memref<8x32xf32, #tpu.memory_space<vmem>>, vector<8x32xf32>,
    } else {
    }
    %c0 = arith.constant 0 : index
    %c0_1 = arith.constant 0 : index
    %c0_2 = arith.constant 0 : index
    %3 = vector.load %arg4[%c0, %c0_1, %c0_2] : memref<1x8x32xf32, #tpu.memory_space<vmem>>, vector<1x8x32xf32>
    %4 = vector.shape_cast %3 : vector<1x8x32xf32> to vector<8x32xf32>
    %5 = arith.truncf %4 : vector<8x32xf32> to vector<8x32xbf16>
    %c0_3 = arith.constant 0 : index
    %c0_4 = arith.constant 0 : index
    %c0_5 = arith.constant 0 : index
    %6 = vector.load %arg5[%c0_3, %c0_4, %c0_5] : memref<1x8x32xf32, #tpu.memory_space<vmem>>, vector<1x8x32xf32>
    %7 = vector.shape_cast %6 : vector<1x8x32xf32> to vector<8x32xf32>
    %8 = arith.truncf %7 : vector<8x32xf32> to vector<8x32xbf16>
    %c0_6 = arith.constant 0 : index
    %c0_7 = arith.constant 0 : index
    %c0_8 = arith.constant 0 : index
    %9 = vector.load %arg6[%c0_6, %c0_7, %c0_8] : memref<1x8x8xi8, #tpu.memory_space<vmem>>, vector<1x8x8xi8>
    %10 = vector.shape_cast %9 : vector<1x8x8xi8> to vector<8x8xi8>
    %c0_9 = arith.constant 0 : index
    %c0_10 = arith.constant 0 : index
    %11 = vector.load %arg8[%c0_9, %c0_10] : memref<8x32xbf16, #tpu.memory_space<vmem>>, vector<8x32xbf16>
    %cst = arith.constant dense<0.000000e+00> : vector<8x8xf32>
    %12 = tpu.matmul %11, %5, %cst {dimension_numbers = #tpu.dot_dimension_numbers<[1], [1], [0], [0], [0, 0, 1, 0], [], []>} : vector<8x32xbf16>, vector<8x32xbf16>, vector<8x8xf32> -> vector<8x8xf32>
    %c0_i8 = arith.constant 0 : i8
    %13 = vector.broadcast %c0_i8 : i8 to vector<8x8xi8>
    %14 = arith.cmpi ne, %10, %13 : vector<8x8xi8>
    %cst_11 = arith.constant 0xFF800000 : f32
    %15 = vector.broadcast %cst_11 : f32 to vector<8x8xf32>
    %16 = arith.select %14, %15, %12 : vector<8x8xi1>, vector<8x8xf32>
    %c0_12 = arith.constant 0 : index
    %c0_13 = arith.constant 0 : index
    %17 = vector.load %arg9[%c0_12, %c0_13] : memref<8x128xf32, #tpu.memory_space<vmem>>, vector<8x128xf32>
    %cst_14 = arith.constant dense<0xFF800000> : vector<8xf32>
    %18 = vector.multi_reduction <maximumf>, %16, %cst_14 [1] : vector<8x8xf32> to vector<8xf32>
    %19 = vector.shape_cast %18 : vector<8xf32> to vector<8x1xf32>
    %20 = vector.broadcast %19 : vector<8x1xf32> to vector<8x128xf32>
    %21 = arith.maximumf %17, %20 : vector<8x128xf32>
    %22 = arith.subf %17, %21 : vector<8x128xf32>
    %23 = math.exp %22 : vector<8x128xf32>
    %24 = vector.extract_strided_slice %21 {offsets = [0, 0], sizes = [8, 8], strides = [1, 1]} : vector<8x128xf32> to vector<8x8xf32>
    %25 = arith.subf %16, %24 : vector<8x8xf32>
    %26 = math.exp %25 : vector<8x8xf32>
    %c0_15 = arith.constant 0 : index
    %c0_16 = arith.constant 0 : index
    %27 = vector.load %arg10[%c0_15, %c0_16] : memref<8x128xf32, #tpu.memory_space<vmem>>, vector<8x128xf32>
    %28 = arith.mulf %23, %27 : vector<8x128xf32>
    %cst_17 = arith.constant dense<0.000000e+00> : vector<8xf32>
    %29 = vector.multi_reduction <add>, %26, %cst_17 [1] : vector<8x8xf32> to vector<8xf32>
    %30 = vector.shape_cast %29 : vector<8xf32> to vector<8x1xf32>
    %31 = vector.broadcast %30 : vector<8x1xf32> to vector<8x128xf32>
    %32 = arith.addf %28, %31 : vector<8x128xf32>
    %c0_18 = arith.constant 0 : index
    %c0_19 = arith.constant 0 : index
    %33 = vector.load %arg10[%c0_18, %c0_19] : memref<8x128xf32, #tpu.memory_space<vmem>>, vector<8x128xf32>
    tpu.vector_store %arg10[%c0_18, %c0_19], %32 {strides = array<i32>} : memref<8x128xf32, #tpu.memory_space<vmem>>, vector<8x128xf32>,
    %34 = vector.extract_strided_slice %23 {offsets = [0, 0], sizes = [8, 32], strides = [1, 1]} : vector<8x128xf32> to vector<8x32xf32>
    %c0_20 = arith.constant 0 : index
    %c0_21 = arith.constant 0 : index
    %35 = vector.load %arg11[%c0_20, %c0_21] : memref<8x32xf32, #tpu.memory_space<vmem>>, vector<8x32xf32>
    %36 = arith.mulf %34, %35 : vector<8x32xf32>
    %37 = arith.truncf %26 : vector<8x8xf32> to vector<8x8xbf16>
    %cst_22 = arith.constant dense<0.000000e+00> : vector<8x32xf32>
    %38 = tpu.matmul %37, %8, %cst_22 {dimension_numbers = #tpu.dot_dimension_numbers<[1], [0], [0], [1], [0, 0, 1, 1], [], []>} : vector<8x8xbf16>, vector<8x32xbf16>, vector<8x32xf32> -> vector<8x32xf32>
    %39 = arith.addf %36, %38 : vector<8x32xf32>
    %c0_23 = arith.constant 0 : index
    %c0_24 = arith.constant 0 : index
    %40 = vector.load %arg11[%c0_23, %c0_24] : memref<8x32xf32, #tpu.memory_space<vmem>>, vector<8x32xf32>
    tpu.vector_store %arg11[%c0_23, %c0_24], %39 {strides = array<i32>} : memref<8x32xf32, #tpu.memory_space<vmem>>, vector<8x32xf32>,
    %c0_25 = arith.constant 0 : index
    %c0_26 = arith.constant 0 : index
    %41 = vector.load %arg9[%c0_25, %c0_26] : memref<8x128xf32, #tpu.memory_space<vmem>>, vector<8x128xf32>
    tpu.vector_store %arg9[%c0_25, %c0_26], %21 {strides = array<i32>} : memref<8x128xf32, #tpu.memory_space<vmem>>, vector<8x128xf32>,
    %c0_i32_27 = arith.constant 0 : i32
    %42 = arith.cmpi eq, %arg2, %c0_i32_27 : i32
    %43 = arith.extui %42 : i1 to i32
    %c0_i32_28 = arith.constant 0 : i32
    %44 = arith.cmpi ne, %43, %c0_i32_28 : i32
    scf.if %44 {
      %c0_29 = arith.constant 0 : index
      %c0_30 = arith.constant 0 : index
      %45 = vector.load %arg10[%c0_29, %c0_30] : memref<8x128xf32, #tpu.memory_space<vmem>>, vector<8x128xf32>
      %46 = tpu.reciprocal %45 : vector<8x128xf32> -> vector<8x128xf32>
      %c0_31 = arith.constant 0 : index
      %c0_32 = arith.constant 0 : index
      %47 = vector.load %arg11[%c0_31, %c0_32] : memref<8x32xf32, #tpu.memory_space<vmem>>, vector<8x32xf32>
      %48 = vector.extract_strided_slice %46 {offsets = [0, 0], sizes = [8, 32], strides = [1, 1]} : vector<8x128xf32> to vector<8x32xf32>
      %49 = arith.mulf %47, %48 : vector<8x32xf32>
      %c0_33 = arith.constant 0 : index
      %c0_34 = arith.constant 0 : index
      %c0_35 = arith.constant 0 : index
      %50 = vector.load %arg7[%c0_33, %c0_34, %c0_35] : memref<1x8x32xf32, #tpu.memory_space<vmem>>, vector<1x8x32xf32>
      %51 = vector.shape_cast %50 : vector<1x8x32xf32> to vector<8x32xf32>
      %52 = vector.shape_cast %49 : vector<8x32xf32> to vector<1x8x32xf32>
      tpu.vector_store %arg7[%c0_33, %c0_34, %c0_35], %52 {strides = array<i32>} : memref<1x8x32xf32, #tpu.memory_space<vmem>>, vector<1x8x32xf32>,
    } else {
    }
    return
  }
  func.func @transform_0(%arg0: i32, %arg1: i32, %arg2: i32) -> (i32, i32, i32) {
    %c0_i32 = arith.constant 0 : i32
    %c0_i32_0 = arith.constant 0 : i32
    return %arg0, %arg1, %c0_i32 : i32, i32, i32
  }
  func.func @transform_1(%arg0: i32, %arg1: i32, %arg2: i32) -> (i32, i32, i32) {
    %c0_i32 = arith.constant 0 : i32
    %c0_i32_0 = arith.constant 0 : i32
    return %arg0, %arg2, %c0_i32 : i32, i32, i32
  }
  func.func @transform_2(%arg0: i32, %arg1: i32, %arg2: i32) -> (i32, i32, i32) {
    %c0_i32 = arith.constant 0 : i32
    %c0_i32_0 = arith.constant 0 : i32
    return %arg0, %arg2, %c0_i32 : i32, i32, i32
  }
  func.func @transform_3(%arg0: i32, %arg1: i32, %arg2: i32) -> (i32, i32, i32) {
    %c0_i32 = arith.constant 0 : i32
    return %arg0, %arg1, %arg2 : i32, i32, i32
  }
  func.func @transform_4(%arg0: i32, %arg1: i32, %arg2: i32) -> (i32, i32, i32) {
    %c0_i32 = arith.constant 0 : i32
    %c0_i32_0 = arith.constant 0 : i32
    return %arg0, %arg1, %c0_i32 : i32, i32, i32
  }
}

</mosaic_0001>

<llo_original>
// kernel: tpu_custom_call.1
$region0: #{tpu_custom_call.1}
  #allocation0 [shape = 'u32[]', space=smem, size = 0x4, offset = 0x4, fixed_abs, tag = 'smem constant byte address 0x4 - core index']
  #allocation1 [shape = 'u32[144,128]{1,0:T(1,128)}', space=vmem, size = 0x12000, scoped, tag = 'internal scratch']
  #allocation2 [shape = 'bf16[8,32]{1,0:T(8,128)(2,1)}', space=vmem, size = 0x800, scoped, tag = 'scratch operand']
  #allocation3 [shape = 'f32[8,128]{1,0:T(8,128)}', space=vmem, size = 0x1000, scoped, tag = 'scratch operand']
  #allocation4 [shape = 'f32[8,128]{1,0:T(8,128)}', space=vmem, size = 0x1000, scoped, tag = 'scratch operand']
  #allocation5 [shape = 'f32[8,32]{1,0:T(8,128)}', space=vmem, size = 0x1000, scoped, tag = 'scratch operand']
  %s0 = inlined_call_operand.hbm [shape: f32[2,8,32], index: 0, kind: input, shape index: {}]
  %s1 = inlined_call_operand.hbm [shape: f32[2,8,32], index: 1, kind: input, shape index: {}]
  %s2 = inlined_call_operand.hbm [shape: f32[2,8,32], index: 2, kind: input, shape index: {}]
  %s3 = inlined_call_operand.vmem [shape: s8[2,8,8], index: 3, kind: input, shape index: {}]
  %s4 = inlined_call_operand.hbm [shape: f32[2,8,32], index: 4, kind: output, shape index: {}]
  %s5 = sld [smem:[#allocation0]]
  $region69: #{tpu_custom_call.1} parent=0
    _
  %s7 = ssub.s32 1, %s5
  %s8 = scalar_select 0, %s7, %s5
  $region1: #{tpu_custom_call.1} parent=0
    #allocation6 [shape = 'u8[8192]{0}', space=vmem, size = 0x2000, scoped, tag = 'input window, operand 0']
    #allocation7 [shape = 's32[2]{0}', space=sflag, size = 0x8, scoped, tag = 'scoped memory for tpu_custom_call.1']
    #allocation8 [shape = 's32[2]{0}', space=sflag, size = 0x8, scoped, tag = 'scoped memory for tpu_custom_call.1']
    #allocation9 [shape = 'u8[8192]{0}', space=vmem, size = 0x2000, scoped, tag = 'input window, operand 1']
    #allocation10 [shape = 's32[2]{0}', space=sflag, size = 0x8, scoped, tag = 'scoped memory for tpu_custom_call.1']
    #allocation11 [shape = 'u8[8192]{0}', space=vmem, size = 0x2000, scoped, tag = 'input window, operand 2']
    #allocation12 [shape = 'u8[8192]{0}', space=vmem, size = 0x2000, scoped, tag = 'output window, operand 0']
    %9 = vsyncpa [#allocation7], 0
    %s10 = scalar_lea.sflag [#allocation7], 1
    %11 = vsyncpa %s10, 0
    %12 = vsyncpa [#allocation10], 0
    %s13 = scalar_lea.sflag [#allocation10], 1
    %14 = vsyncpa %s13, 0
    %15 = vsyncpa [#allocation8], 0
    %s16 = scalar_lea.sflag [#allocation8], 1
    %17 = vsyncpa %s16, 0
    loop: start=0, step=1, limit=4
    $region2: #{tpu_custom_call.1} parent=1 // loop_pre_header
      _
    $region3: #{tpu_custom_call.1} parent=1 // loop_header
      %s19 = sphi 0, %s23
      %p20 = scmp.ge.s32.totalorder %s19, 4
      %s26 = sphi 0, %s45
      %s27 = sphi 0, %s41
      %s28 = sphi 0, %s37
      %s29 = sphi 0, %s26
      %s30 = sphi 0, %s27
      %s31 = sphi 0, %s28
      %s32 = sphi 0, %s29
      %s33 = sphi 0, %s30
      %s34 = sphi 0, %s31
      %s50 = sphi 0, %s52
      %s53 = sphi 0, %s50
      %s54 = sphi 0, %s53
      %s70 = sphi 0, %s54
      %s78 = sphi 0, %s80
      %s81 = sphi 0, %s78
      %s82 = sphi 0, %s81
      %s98 = sphi 0, %s82
      %s106 = sphi 0, %s108
      %s109 = sphi 0, %s106
      %s110 = sphi 0, %s109
      %s126 = sphi 0, %s110
      %s136 = sphi 0, %s138
      %s139 = sphi 0, %s136
      %s140 = sphi 0, %s139
      %s156 = sphi 0, %s140
      %s164 = sphi 0, %s166
      %s167 = sphi 0, %s164
      %s168 = sphi 0, %s167
      %s184 = sphi 0, %s168
    $region4: #{tpu_custom_call.1} parent=1 // loop_header_branch
      %22 = sbr.rel (%p20) target = $region8
    $region5: #{tpu_custom_call.1} parent=1 // loop_body
      %s24 = ssub.s32 %s19, 1
      %s25 = ssub.s32 %s19, 2
      %s35 = sadd.s32 1, %s28
      %p36 = scmp.ge.s32.totalorder %s35, 1
      %s37 = scalar_select %p36, 0, %s35
      %s38 = sadd.s32 1, %s27
      %s39 = scalar_select %p36, %s38, %s27
      %p40 = scmp.ge.s32.totalorder %s39, 1
      %s41 = scalar_select %p40, 0, %s39
      %s42 = sadd.s32 1, %s26
      %s43 = scalar_select %p40, %s42, %s26
      %p44 = scmp.ge.s32.totalorder %s43, 2
      %s45 = scalar_select %p44, 0, %s43
      %s46 = ssub.s32 %s26, %s45
      %s47 = ssub.s32 %s27, %s41
      %s48 = sor.u32 %s46, %s47
      %p49 = scmp.eq.s32.totalorder %s48, 0
      %s51 = sadd.s32 %s50, 1
      %s52 = scalar_select %p49, %s50, %s51
      %p55 = pneg %p49
      %p56 = scmp.eq.s32.totalorder %s19, 1
      %p57 = por %p55, %p56
      %p58 = scmp.ne.s32.totalorder %s50, %s53
      %p59 = scmp.eq.s32.totalorder %s19, 0
      %p60 = por %p58, %p59
      %p61 = scmp.ne.s32.totalorder %s50, %s53
      %p62 = scmp.eq.s32.totalorder %s24, 1
      %p63 = por %p61, %p62
      %p64 = scmp.ne.s32.totalorder %s53, %s54
      %p65 = scmp.eq.s32.totalorder %s24, 0
      %p66 = por %p64, %p65
      %p67 = scmp.ne.s32.totalorder %s53, %s54
      %p68 = scmp.eq.s32.totalorder %s25, 1
      %p69 = por %p67, %p68
      %p71 = scmp.ne.s32.totalorder %s54, %s70
      %p72 = scmp.eq.s32.totalorder %s25, 0
      %p73 = por %p71, %p72
      %s74 = ssub.s32 %s26, %s45
      %s75 = ssub.s32 %s28, %s37
      %s76 = sor.u32 %s74, %s75
      %p77 = scmp.eq.s32.totalorder %s76, 0
      %s79 = sadd.s32 %s78, 1
      %s80 = scalar_select %p77, %s78, %s79
      %p83 = pneg %p77
      %p84 = scmp.eq.s32.totalorder %s19, 1
      %p85 = por %p83, %p84
      %p86 = scmp.ne.s32.totalorder %s78, %s81
      %p87 = scmp.eq.s32.totalorder %s19, 0
      %p88 = por %p86, %p87
      %p89 = scmp.ne.s32.totalorder %s78, %s81
      %p90 = scmp.eq.s32.totalorder %s24, 1
      %p91 = por %p89, %p90
      %p92 = scmp.ne.s32.totalorder %s81, %s82
      %p93 = scmp.eq.s32.totalorder %s24, 0
      %p94 = por %p92, %p93
      %p95 = scmp.ne.s32.totalorder %s81, %s82
      %p96 = scmp.eq.s32.totalorder %s25, 1
      %p97 = por %p95, %p96
      %p99 = scmp.ne.s32.totalorder %s82, %s98
      %p100 = scmp.eq.s32.totalorder %s25, 0
      %p101 = por %p99, %p100
      %s102 = ssub.s32 %s26, %s45
      %s103 = ssub.s32 %s28, %s37
      %s104 = sor.u32 %s102, %s103
      %p105 = scmp.eq.s32.totalorder %s104, 0
      %s107 = sadd.s32 %s106, 1
      %s108 = scalar_select %p105, %s106, %s107
      %p111 = pneg %p105
      %p112 = scmp.eq.s32.totalorder %s19, 1
      %p113 = por %p111, %p112
      %p114 = scmp.ne.s32.totalorder %s106, %s109
      %p115 = scmp.eq.s32.totalorder %s19, 0
      %p116 = por %p114, %p115
      %p117 = scmp.ne.s32.totalorder %s106, %s109
      %p118 = scmp.eq.s32.totalorder %s24, 1
      %p119 = por %p117, %p118
      %p120 = scmp.ne.s32.totalorder %s109, %s110
      %p121 = scmp.eq.s32.totalorder %s24, 0
      %p122 = por %p120, %p121
      %p123 = scmp.ne.s32.totalorder %s109, %s110
      %p124 = scmp.eq.s32.totalorder %s25, 1
      %p125 = por %p123, %p124
      %p127 = scmp.ne.s32.totalorder %s110, %s126
      %p128 = scmp.eq.s32.totalorder %s25, 0
      %p129 = por %p127, %p128
      %s130 = ssub.s32 %s26, %s45
      %s131 = ssub.s32 %s27, %s41
      %s132 = sor.u32 %s130, %s131
      %s133 = ssub.s32 %s28, %s37
      %s134 = sor.u32 %s132, %s133
      %p135 = scmp.eq.s32.totalorder %s134, 0
      %s137 = sadd.s32 %s136, 1
      %s138 = scalar_select %p135, %s136, %s137
      %p141 = pneg %p135
      %p142 = scmp.eq.s32.totalorder %s19, 1
      %p143 = por %p141, %p142
      %p144 = scmp.ne.s32.totalorder %s136, %s139
      %p145 = scmp.eq.s32.totalorder %s19, 0
      %p146 = por %p144, %p145
      %p147 = scmp.ne.s32.totalorder %s136, %s139
      %p148 = scmp.eq.s32.totalorder %s24, 1
      %p149 = por %p147, %p148
      %p150 = scmp.ne.s32.totalorder %s139, %s140
      %p151 = scmp.eq.s32.totalorder %s24, 0
      %p152 = por %p150, %p151
      %p153 = scmp.ne.s32.totalorder %s139, %s140
      %p154 = scmp.eq.s32.totalorder %s25, 1
      %p155 = por %p153, %p154
      %p157 = scmp.ne.s32.totalorder %s140, %s156
      %p158 = scmp.eq.s32.totalorder %s25, 0
      %p159 = por %p157, %p158
      %s160 = ssub.s32 %s26, %s45
      %s161 = ssub.s32 %s27, %s41
      %s162 = sor.u32 %s160, %s161
      %p163 = scmp.eq.s32.totalorder %s162, 0
      %s165 = sadd.s32 %s164, 1
      %s166 = scalar_select %p163, %s164, %s165
      %p169 = pneg %p163
      %p170 = scmp.eq.s32.totalorder %s19, 1
      %p171 = por %p169, %p170
      %p172 = scmp.ne.s32.totalorder %s164, %s167
      %p173 = scmp.eq.s32.totalorder %s19, 0
      %p174 = por %p172, %p173
      %p175 = scmp.ne.s32.totalorder %s164, %s167
      %p176 = scmp.eq.s32.totalorder %s24, 1
      %p177 = por %p175, %p176
      %p178 = scmp.ne.s32.totalorder %s167, %s168
      %p179 = scmp.eq.s32.totalorder %s24, 0
      %p180 = por %p178, %p179
      %p181 = scmp.ne.s32.totalorder %s167, %s168
      %p182 = scmp.eq.s32.totalorder %s25, 1
      %p183 = por %p181, %p182
      %p185 = scmp.ne.s32.totalorder %s168, %s184
      %p186 = scmp.eq.s32.totalorder %s25, 0
      %p187 = por %p185, %p186
      %p188 = scmp.le.s32.totalorder 1, %s19
      %p189 = scmp.lt.s32.totalorder %s19, 3
      %p190 = pnand %p188, %p189
      %p191 = pneg %p190
      // Predicated region
      $region9: #{tpu_custom_call.1} parent=5 // pred_check
        _
      $region10: #{tpu_custom_call.1} parent=5 // pred_check_branch
        %193 = sbr.rel (%p190) target = $region12
      $region11: #{tpu_custom_call.1} parent=5 // pred_region
        %s194 = ssub.s32 %s19, 1
      $region12: #{tpu_custom_call.1} parent=5 // pred_fallthru
        _
      %p195 = scmp.lt.s32.totalorder %s19, 2
      // Predicated region
      $region13: #{tpu_custom_call.1} parent=5 // pred_check
        %p196 = pneg %p195
      $region14: #{tpu_custom_call.1} parent=5 // pred_check_branch
        %198 = sbr.rel (%p196) target = $region16
      $region15: #{tpu_custom_call.1} parent=5 // pred_region
        // Predicated region
        $region17: #{tpu_custom_call.1} parent=15 // pred_check
          %p199 = pneg %p60
        $region18: #{tpu_custom_call.1} parent=15 // pred_check_branch
          %201 = sbr.rel (%p199) target = $region20
        $region19: #{tpu_custom_call.1} parent=15 // pred_region
          %s202 = sand.u32 %s50, 1
          %s203 = scalar_lea.sflag [#allocation7], %s202
          %s204 = sand.u32 %s50, 1
          %s205 = smul.addr %s204, 8
          %s206 = scalar_lea.vmem [#allocation6], %s205
          %s208 = ssub.s32 128, 128
          %209 = vsyncadd %s203, %s208
          %s210 = sadd.s32 %s27, %s26
          %s211 = smul.addr %s210, 128
          %s212 = scalar_lea.hbm %s0, %s211
          %s214 = sshll.u32 %s206, 4
          %s215 = int_to_ptr.vmem [resolvable:$true] %s214
          %217 = dma.hbm_to_vmem [thread:$0]  %s212, 128, %s215, %s203
        $region20: #{tpu_custom_call.1} parent=15 // pred_fallthru
          _
        // Predicated region
        $region21: #{tpu_custom_call.1} parent=15 // pred_check
          %p218 = pneg %p88
        $region22: #{tpu_custom_call.1} parent=15 // pred_check_branch
          %220 = sbr.rel (%p218) target = $region24
        $region23: #{tpu_custom_call.1} parent=15 // pred_region
          %s221 = sand.u32 %s19, 1
          %s222 = scalar_lea.sflag [#allocation10], %s221
          %s223 = sand.u32 %s78, 1
          %s224 = smul.addr %s223, 8
          %s225 = scalar_lea.vmem [#allocation9], %s224
          %s227 = ssub.s32 128, 128
          %228 = vsyncadd %s222, %s227
          %s229 = sadd.s32 %s28, %s26
          %s230 = smul.addr %s229, 128
          %s231 = scalar_lea.hbm %s1, %s230
          %s233 = sshll.u32 %s225, 4
          %s234 = int_to_ptr.vmem [resolvable:$true] %s233
          %236 = dma.hbm_to_vmem [thread:$0]  %s231, 128, %s234, %s222
        $region24: #{tpu_custom_call.1} parent=15 // pred_fallthru
          _
        // Predicated region
        $region25: #{tpu_custom_call.1} parent=15 // pred_check
          %p237 = pneg %p116
        $region26: #{tpu_custom_call.1} parent=15 // pred_check_branch
          %239 = sbr.rel (%p237) target = $region28
        $region27: #{tpu_custom_call.1} parent=15 // pred_region
          %s240 = sand.u32 %s19, 1
          %s241 = scalar_lea.sflag [#allocation10], %s240
          %s242 = sand.u32 %s106, 1
          %s243 = smul.addr %s242, 8
          %s244 = scalar_lea.vmem [#allocation11], %s243
          %s246 = ssub.s32 128, 128
          %247 = vsyncadd %s241, %s246
          %s248 = sadd.s32 %s28, %s26
          %s249 = smul.addr %s248, 128
          %s250 = scalar_lea.hbm %s2, %s249
          %s252 = sshll.u32 %s244, 4
          %s253 = int_to_ptr.vmem [resolvable:$true] %s252
          %255 = dma.hbm_to_vmem [thread:$0]  %s250, 128, %s253, %s241
        $region28: #{tpu_custom_call.1} parent=15 // pred_fallthru
          _
        // Predicated region
        $region29: #{tpu_custom_call.1} parent=15 // pred_check
          %p256 = pneg %p146
        $region30: #{tpu_custom_call.1} parent=15 // pred_check_branch
          %258 = sbr.rel (%p256) target = $region32
        $region31: #{tpu_custom_call.1} parent=15 // pred_region
          %p259 = scmp.lt.s32.totalorder %s26, 1
          %s260 = scalar_select %p259, %s26, 1
          %p261 = scmp.lt.s32.totalorder %s27, 0
          %s262 = scalar_select %p261, %s27, 0
          %p263 = scmp.lt.s32.totalorder %s28, 0
          %s264 = scalar_select %p263, %s28, 0
          %s265 = sadd.s32 %s264, %s262
          %s266 = sadd.s32 %s265, %s260
          %s267 = smul.addr %s266, 2
          %s268 = scalar_lea.vmem %s3, %s267
        $region32: #{tpu_custom_call.1} parent=15 // pred_fallthru
          _
      $region16: #{tpu_custom_call.1} parent=5 // pred_fallthru
        _
      %p269 = scmp.le.s32.totalorder 1, %s19
      %p270 = scmp.lt.s32.totalorder %s19, 3
      %p271 = pnand %p269, %p270
      %p272 = pneg %p271
      // Predicated region
      $region33: #{tpu_custom_call.1} parent=5 // pred_check
        _
      $region34: #{tpu_custom_call.1} parent=5 // pred_check_branch
        %274 = sbr.rel (%p271) target = $region36
      $region35: #{tpu_custom_call.1} parent=5 // pred_region
        %s275 = ssub.s32 %s19, 1
        %s276 = sand.u32 %s53, 1
        %s277 = scalar_lea.sflag [#allocation7], %s276
        %s278 = sand.u32 %s53, 1
        %s279 = smul.addr %s278, 8
        %s280 = scalar_lea.vmem [#allocation6], %s279
        // Predicated region
        $region37: #{tpu_custom_call.1} parent=35 // pred_check
          %p281 = pneg %p66
        $region38: #{tpu_custom_call.1} parent=35 // pred_check_branch
          %283 = sbr.rel (%p281) target = $region40
        $region39: #{tpu_custom_call.1} parent=35 // pred_region
          %284 = dma.done %s277, 128
        $region40: #{tpu_custom_call.1} parent=35 // pred_fallthru
          _
        %s285 = sand.u32 %s24, 1
        %s286 = scalar_lea.sflag [#allocation10], %s285
        %s287 = sand.u32 %s81, 1
        %s288 = smul.addr %s287, 8
        %s289 = scalar_lea.vmem [#allocation9], %s288
        // Predicated region
        $region41: #{tpu_custom_call.1} parent=35 // pred_check
          %p290 = pneg %p94
        $region42: #{tpu_custom_call.1} parent=35 // pred_check_branch
          %292 = sbr.rel (%p290) target = $region44
        $region43: #{tpu_custom_call.1} parent=35 // pred_region
          %293 = dma.done %s286, 128
        $region44: #{tpu_custom_call.1} parent=35 // pred_fallthru
          _
        %s294 = sand.u32 %s24, 1
        %s295 = scalar_lea.sflag [#allocation10], %s294
        %s296 = sand.u32 %s109, 1
        %s297 = smul.addr %s296, 8
        %s298 = scalar_lea.vmem [#allocation11], %s297
        // Predicated region
        $region45: #{tpu_custom_call.1} parent=35 // pred_check
          %p299 = pneg %p122
        $region46: #{tpu_custom_call.1} parent=35 // pred_check_branch
          %301 = sbr.rel (%p299) target = $region48
        $region47: #{tpu_custom_call.1} parent=35 // pred_region
          %302 = dma.done %s295, 128
        $region48: #{tpu_custom_call.1} parent=35 // pred_fallthru
          _
        %s303 = sand.u32 %s53, 1
        %s304 = scalar_lea.sflag [#allocation7], %s303
        %s305 = sand.u32 %s53, 1
        %s306 = smul.addr %s305, 8
        %s307 = scalar_lea.vmem [#allocation6], %s306
        %p308 = pneg %p66
        %p309 = pneg %p63
        %s310 = sand.u32 %s24, 1
        %s311 = scalar_lea.sflag [#allocation10], %s310
        %s312 = sand.u32 %s81, 1
        %s313 = smul.addr %s312, 8
        %s314 = scalar_lea.vmem [#allocation9], %s313
        %p315 = pneg %p94
        %p316 = pneg %p91
        %s317 = sand.u32 %s24, 1
        %s318 = scalar_lea.sflag [#allocation10], %s317
        %s319 = sand.u32 %s109, 1
        %s320 = smul.addr %s319, 8
        %s321 = scalar_lea.vmem [#allocation11], %s320
        %p322 = pneg %p122
        %p323 = pneg %p119
        %p324 = scmp.lt.s32.totalorder %s29, 1
        %s325 = scalar_select %p324, %s29, 1
        %p326 = scmp.lt.s32.totalorder %s30, 0
        %s327 = scalar_select %p326, %s30, 0
        %p328 = scmp.lt.s32.totalorder %s31, 0
        %s329 = scalar_select %p328, %s31, 0
        %s330 = sadd.s32 %s329, %s327
        %s331 = sadd.s32 %s330, %s325
        %s332 = smul.addr %s331, 2
        %s333 = scalar_lea.vmem %s3, %s332
        %p334 = pneg %p152
        %p335 = pneg %p149
        %p336 = pneg %p180
        %p337 = pneg %p177
        %s338 = sand.u32 %s167, 1
        %s339 = scalar_lea.sflag [#allocation8], %s338
        %s340 = sand.u32 %s167, 1
        %s341 = smul.addr %s340, 8
        %s342 = scalar_lea.vmem [#allocation12], %s341
        %p343 = scmp.lt.s32.totalorder %s29, 1
        %s344 = scalar_select %p343, %s29, 1
        %p345 = scmp.lt.s32.totalorder %s30, 0
        %s346 = scalar_select %p345, %s30, 0
        %p347 = scmp.lt.s32.totalorder %s31, 0
        %s348 = scalar_select %p347, %s31, 0
        %s349 = sadd.s32 %s348, %s346
        %s350 = sadd.s32 %s349, %s344
        %s351 = smul.addr %s350, 2
        %s352 = scalar_lea.vmem %s3, %s351
        %p356 = scmp.eq.s32.totalorder %s31, 0
        // Predicated region
        $region49: #{tpu_custom_call.1} parent=35 // pred_check
          %p357 = pneg %p356
        $region50: #{tpu_custom_call.1} parent=35 // pred_check_branch
          %359 = sbr.rel (%p357) target = $region52
        $region51: #{tpu_custom_call.1} parent=35 // pred_region
          %v360 = vld [vmem:[%s280] sm:$0xff]
          %v361 = vmul.f32 %v360, 0.17677669
          %v362 = vpack.c.bf16 %v361, %v361
          %vm363 = vcmask 257024
          %364 = vst.msk [vmem:[#allocation2] sm:$0xf] %vm363, %v362
          %365 = vst [vmem:[#allocation3] sm:$0xff] -2.3819763e+38
          %366 = vst [vmem:[#allocation4] sm:$0xff] 0.0
          %vm367 = vcmask 261120
          %368 = vst.msk [vmem:[#allocation5] sm:$0xff] %vm367, 0.0
        $region52: #{tpu_custom_call.1} parent=35 // pred_fallthru
          _
        %v369 = vld [vmem:[%s289] sm:$0xff]
        %v370 = vpack.c.bf16 %v369, %v369
        %v371 = vld [vmem:[%s298] sm:$0xff]
        %v372 = vpack.c.bf16 %v371, %v371
        %v373 = vld [vmem:[%s352] sm:$0x3]
        %v374 = vld [vmem:[#allocation2] sm:$0xf]
        %vm375 = vcmask 261120
        %v377 = vsel %vm375, %v374, 0
        %v380 = vsel %vm375, %v370, 0
        %382 = vmatprep.subr.bf16.mxu0 0
        %383 = vmatpush1.bf16.xpose.msra.mxu0 0
        %384 = vmatprep.subr.bf16.mxu0 0
        %385 = vmatpush1.bf16.xpose.msra.mxu0 0
        %386 = vmatprep.subr.bf16.mxu0 0
        %387 = vmatpush1.bf16.xpose.msra.mxu0 0
        %388 = vmatprep.subr.bf16.mxu0 0
        %389 = vmatpush1.bf16.xpose.msra.mxu0 0
        %390 = vmatprep.subr.bf16.mxu0 0
        %391 = vmatpush1.bf16.xpose.msra.mxu0 0
        %392 = vmatprep.subr.bf16.mxu0 0
        %393 = vmatpush1.bf16.xpose.msra.mxu0 0
        %394 = vmatprep.subr.bf16.mxu0 0
        %395 = vmatpush1.bf16.xpose.msra.mxu0 0
        %396 = vmatprep.subr.bf16.mxu0 0
        %397 = vmatpush1.bf16.xpose.msra.mxu0 %v380
        %398 = vmatprep.subr.bf16.mxu0 0
        %399 = vmatpush2.bf16.xpose.msra.mxu0 0
        %400 = vmatprep.subr.bf16.mxu0 0
        %401 = vmatpush2.bf16.xpose.msra.mxu0 0
        %402 = vmatprep.subr.bf16.mxu0 0
        %403 = vmatpush2.bf16.xpose.msra.mxu0 0
        %404 = vmatprep.subr.bf16.mxu0 0
        %405 = vmatpush2.bf16.xpose.msra.mxu0 0
        %406 = vmatprep.subr.bf16.mxu0 0
        %407 = vmatpush2.bf16.xpose.msra.mxu0 0
        %408 = vmatprep.subr.bf16.mxu0 0
        %409 = vmatpush2.bf16.xpose.msra.mxu0 0
        %410 = vmatprep.subr.bf16.mxu0 0
        %411 = vmatpush2.bf16.xpose.msra.mxu0 0
        %412 = vmatprep.subr.bf16.mxu0 0
        %413 = vmatpush2.bf16.xpose.msra.mxu0 0
        %414 = vmatprep.mubr.bf16.mxu0 0
        %415 = vmatmul.mubr.bf16.gmra.mxu0 %v377
        %v416 = vpop.f32.mrf.mxu0
        %v417 = vadd.f32 0.0, %v416
        %v418 = vpop.f32.mrf.mxu0
        %v419 = vpop.f32.mrf.mxu0
        %v420 = vpop.f32.mrf.mxu0
        %421 = vdwg.mxu0
        %vm422 = vnez %v373
        %v423 = vsel %vm422, 16843009, 0
        %v424 = vunpack.c.0.s8 %v423
        %vm425 = vcmp.ne.s32.totalorder %v424, 0
        %v426 = vsel %vm425, -inf, %v417
        %v427 = vld [vmem:[#allocation3] sm:$0xff]
        %vm428 = vcmask 64512
        %v429 = vsel %vm428, %v426, -inf
        %430 = vmax.xlane.f32.xlu0 %v429
        %v431 = vpop.xlane.xlu0 %430
        %v432 = vmax.f32 %v427, %v431
        %v433 = vsub.f32 %v427, %v432
        %v434 = vmul.f32 %v433, 1.442695
        %v435 = vpow.pop %v434
        %v436 = vsub.f32 %v426, %v432
        %v437 = vmul.f32 %v436, 1.442695
        %v438 = vpow.pop %v437
        %v439 = vld [vmem:[#allocation4] sm:$0xff]
        %v440 = vmul.f32 %v435, %v439
        %v441 = vsel %vm428, %v438, 0.0
        %442 = vadd.xlane.f32.xlu0 %v441
        %v443 = vpop.xlane.xlu0 %442
        %v444 = vadd.f32 %v440, %v443
        %445 = vst [vmem:[#allocation4] sm:$0xff] %v444
        %v446 = vld [vmem:[#allocation5] sm:$0xff]
        %v447 = vmul.f32 %v435, %v446
        %v448 = vpack.c.bf16 %v438, %v438
        %v450 = vsel %vm428, %v448, 0
        %vm452 = vcmask 1043456
        %v454 = vsel %vm452, %v372, 0
        %456 = vmatprep.subr.bf16.mxu0 0
        %457 = vmatpush1.bf16.msra.mxu0 0
        %458 = vmatprep.subr.bf16.mxu0 0
        %459 = vmatpush1.bf16.msra.mxu0 0
        %460 = vmatprep.subr.bf16.mxu0 0
        %461 = vmatpush1.bf16.msra.mxu0 0
        %462 = vmatprep.subr.bf16.mxu0 0
        %463 = vmatpush1.bf16.msra.mxu0 0
        %464 = vmatprep.subr.bf16.mxu0 0
        %465 = vmatpush1.bf16.msra.mxu0 0
        %466 = vmatprep.subr.bf16.mxu0 0
        %467 = vmatpush1.bf16.msra.mxu0 0
        %468 = vmatprep.subr.bf16.mxu0 0
        %469 = vmatpush1.bf16.msra.mxu0 0
        %470 = vmatprep.subr.bf16.mxu0 0
        %471 = vmatpush1.bf16.msra.mxu0 %v454
        %472 = vmatprep.subr.bf16.mxu0 0
        %473 = vmatpush2.bf16.msra.mxu0 0
        %474 = vmatprep.subr.bf16.mxu0 0
        %475 = vmatpush2.bf16.msra.mxu0 0
        %476 = vmatprep.subr.bf16.mxu0 0
        %477 = vmatpush2.bf16.msra.mxu0 0
        %478 = vmatprep.subr.bf16.mxu0 0
        %479 = vmatpush2.bf16.msra.mxu0 0
        %480 = vmatprep.subr.bf16.mxu0 0
        %481 = vmatpush2.bf16.msra.mxu0 0
        %482 = vmatprep.subr.bf16.mxu0 0
        %483 = vmatpush2.bf16.msra.mxu0 0
        %484 = vmatprep.subr.bf16.mxu0 0
        %485 = vmatpush2.bf16.msra.mxu0 0
        %486 = vmatprep.subr.bf16.mxu0 0
        %487 = vmatpush2.bf16.msra.mxu0 0
        %488 = vmatprep.mubr.bf16.mxu0 0
        %489 = vmatmul.mubr.bf16.gmra.mxu0 %v450
        %v490 = vpop.f32.mrf.mxu0
        %v491 = vadd.f32 0.0, %v490
        %v492 = vpop.f32.mrf.mxu0
        %v493 = vpop.f32.mrf.mxu0
        %v494 = vpop.f32.mrf.mxu0
        %495 = vdwg.mxu0
        %v496 = vadd.f32 %v447, %v491
        %497 = vst.msk [vmem:[#allocation5] sm:$0xff] %vm375, %v496
        %498 = vst [vmem:[#allocation3] sm:$0xff] %v432
        // Predicated region
        $region53: #{tpu_custom_call.1} parent=35 // pred_check
          %p499 = pneg %p356
        $region54: #{tpu_custom_call.1} parent=35 // pred_check_branch
          %501 = sbr.rel (%p499) target = $region56
        $region55: #{tpu_custom_call.1} parent=35 // pred_region
          %v502 = vld [vmem:[#allocation4] sm:$0xff]
          %v503 = vrcp.pop %v502
          %v504 = vld [vmem:[#allocation5] sm:$0xff]
          %v505 = vmul.f32 %v504, %v503
          %506 = vst.msk [vmem:[%s342] sm:$0xff] %vm375, %v505
        $region56: #{tpu_custom_call.1} parent=35 // pred_fallthru
          _
        %s507 = sand.u32 %s167, 1
        %s508 = scalar_lea.sflag [#allocation8], %s507
        %s509 = sand.u32 %s167, 1
        %s510 = smul.addr %s509, 8
        %s511 = scalar_lea.vmem [#allocation12], %s510
        // Predicated region
        $region57: #{tpu_custom_call.1} parent=35 // pred_check
          %p512 = pneg %p177
        $region58: #{tpu_custom_call.1} parent=35 // pred_check_branch
          %514 = sbr.rel (%p512) target = $region60
        $region59: #{tpu_custom_call.1} parent=35 // pred_region
          %s516 = ssub.s32 128, 128
          %517 = vsyncadd %s508, %s516
          %s518 = sadd.s32 %s30, %s29
          %s519 = smul.addr %s518, 128
          %s520 = scalar_lea.hbm %s4, %s519
          %s522 = sshll.u32 %s511, 4
          %s523 = int_to_ptr.vmem [resolvable:$true] %s522
          %525 = dma.vmem_to_hbm [thread:$0]  %s523, 128, %s520, %s508
        $region60: #{tpu_custom_call.1} parent=35 // pred_fallthru
          _
      $region36: #{tpu_custom_call.1} parent=5 // pred_fallthru
        _
      %p526 = scmp.le.s32.totalorder 2, %s19
      // Predicated region
      $region61: #{tpu_custom_call.1} parent=5 // pred_check
        %p527 = pneg %p526
      $region62: #{tpu_custom_call.1} parent=5 // pred_check_branch
        %529 = sbr.rel (%p527) target = $region64
      $region63: #{tpu_custom_call.1} parent=5 // pred_region
        %s530 = ssub.s32 %s19, 2
        // Predicated region
        $region65: #{tpu_custom_call.1} parent=63 // pred_check
          %p531 = pneg %p183
        $region66: #{tpu_custom_call.1} parent=63 // pred_check_branch
          %533 = sbr.rel (%p531) target = $region68
        $region67: #{tpu_custom_call.1} parent=63 // pred_region
          %s534 = sand.u32 %s168, 1
          %s535 = scalar_lea.sflag [#allocation8], %s534
          %s536 = sand.u32 %s168, 1
          %s537 = smul.addr %s536, 8
          %s538 = scalar_lea.vmem [#allocation12], %s537
          %539 = dma.done %s535, 128
        $region68: #{tpu_custom_call.1} parent=63 // pred_fallthru
          _
      $region64: #{tpu_custom_call.1} parent=5 // pred_fallthru
        _
    $region6: #{tpu_custom_call.1} parent=1 // loop_footer
      %s23 = sadd.s32 1, %s19
    $region7: #{tpu_custom_call.1} parent=1 // loop_footer_branch
      %18 = sbr.rel target = $region3
    $region8: #{tpu_custom_call.1} parent=1 // loop_exit
      _
    %540 = vsyncpa [#allocation7], 1
    %s541 = scalar_lea.sflag [#allocation7], 1
    %542 = vsyncpa %s541, 1
    %543 = vsyncpa [#allocation10], 1
    %s544 = scalar_lea.sflag [#allocation10], 1
    %545 = vsyncpa %s544, 1
    %546 = vsyncpa [#allocation8], 1
    %s547 = scalar_lea.sflag [#allocation8], 1
    %548 = vsyncpa %s547, 1

</llo_original>
